<compile_context>
chip_gen: v7x
topology: tpu7x:2x2x1
jax: 0.10.0
libtpu: 0.0.40
codegen_flags: <defaults>
</compile_context>

<pallas_src>
import functools

import jax
import jax.numpy as jnp
from jax import lax
from jax.experimental import pallas as pl
from jax.experimental.pallas import tpu as pltpu

_BN_EPS = 1e-5


def _round_up(n, m):
    return (n + m - 1) // m * m


# ----------------------------------------------------------------------------
# Activations (all elementwise math in f32)
# ----------------------------------------------------------------------------
def _apply_act(y, act):
    if act == "relu":
        return jnp.maximum(y, 0.0)
    if act == "leaky":
        return jnp.maximum(y, 0.2 * y)          # LeakyReLU(0.2)
    if act == "tanh":
        return jnp.tanh(y)                       # EUP
    if act == "sigmoid":
        # Numerically stable sigmoid; exp and reciprocal both go to the EUP.
        e = jnp.exp(-jnp.abs(y))
        return jnp.where(y >= 0, 1.0, e) * pl.reciprocal(1.0 + e, approx=True)
    raise ValueError(f"unknown activation: {act}")


# ----------------------------------------------------------------------------
# Pallas kernels
# ----------------------------------------------------------------------------
def _pw_bias_act_kernel(x_ref, w_ref, b_ref, o_ref, *, act):
    """y = W @ x + bias, activation.  x_ref: (1, Cin, t_hw) f32 (cast on-chip)."""
    xb = x_ref[0].astype(jnp.bfloat16)
    y = jnp.dot(w_ref[...], xb, preferred_element_type=jnp.float32)
    o_ref[0] = _apply_act(y + b_ref[...], act).astype(o_ref.dtype)


def _pw_scale_shift_act_kernel(x_ref, w_ref, scale_ref, shift_ref, o_ref, *, act):
    """BN pass 2: y = (W @ x) * scale + shift, activation."""
    xb = x_ref[0].astype(jnp.bfloat16)
    y = jnp.dot(w_ref[...], xb, preferred_element_type=jnp.float32)
    o_ref[0] = _apply_act(y * scale_ref[...] + shift_ref[...], act).astype(o_ref.dtype)


def _bn_stats_kernel(x_ref, colsum_ref, gram_ref):
    """BN pass 1: accumulate per-channel column sums and the Gram matrix of x.

    colsum (Cin, 1) and gram (Cin, Cin) are output accumulators (constant block
    index across the whole grid).  Zero-padded spatial lanes contribute zero to
    both, so BN statistics stay exact.
    """
    @pl.when((pl.program_id(0) == 0) & (pl.program_id(1) == 0))
    def _():
        colsum_ref[...] = jnp.zeros_like(colsum_ref)
        gram_ref[...] = jnp.zeros_like(gram_ref)

    xb = x_ref[0].astype(jnp.bfloat16)           # same quantization as pass 2
    colsum_ref[...] += jnp.sum(xb.astype(jnp.float32), axis=1, keepdims=True)
    gram_ref[...] += lax.dot_general(             # X @ X^T, contract over lanes
        xb, xb, (((1,), (1,)), ((), ())), preferred_element_type=jnp.float32)


def _pwconv_bn_fused_kernel(x_ref, w_ref, g_ref, bt_ref, o_ref, y_ref, *, inv_m, act):
    """Single-call BN fast path: everything resident in VMEM, x read once.

    inv_m is a pure function of the static block shapes, so baking it cannot
    cause extra Mosaic recompiles beyond the shape change itself.
    """
    B = x_ref.shape[0]
    w = w_ref[...]
    s = jnp.zeros((w.shape[0], 1), jnp.float32)
    ss = jnp.zeros_like(s)
    for b in range(B):                           # static unroll (small B only)
        y = jnp.dot(w, x_ref[b].astype(jnp.bfloat16),
                    preferred_element_type=jnp.float32)
        y_ref[b] = y
        s = s + jnp.sum(y, axis=1, keepdims=True)
        ss = ss + jnp.sum(y * y, axis=1, keepdims=True)
    mean = s * inv_m
    var = jnp.maximum(ss * inv_m - mean * mean, 0.0)   # biased (PyTorch)
    scale = lax.rsqrt(var + _BN_EPS) * g_ref[...]
    shift = bt_ref[...] - mean * scale
    for b in range(B):
        o_ref[b] = _apply_act(y_ref[b] * scale + shift, act).astype(o_ref.dtype)


# ----------------------------------------------------------------------------
# Public wrapper (PyTorch NCHW parity at the boundary, no transposes)
# ----------------------------------------------------------------------------
def pwconv_forward(x, weight, *, bias=None, gamma=None, beta=None, is_bn=False,
                   act_name="relu", out_dtype=jnp.float32, hw_tile=None,
                   hw_tile_budget_bytes=20 << 20, fused_bn_bytes=8 << 20):
    """PWConv forward.

    x      : (B, Cin, H, W) f32 (NCHW, PyTorch convention)
    weight : (Cout, Cin, 1, 1) f32
    bias   : (Cout,)   used when is_bn=False  (PyTorch: bias = not is_bn)
    gamma, beta : (Cout,) BatchNorm affine params, used when is_bn=True
    returns (B, Cout, H, W) out_dtype
    """
    act = act_name.lower()
    B, Cin, H, W = x.shape
    Cout = weight.shape[0]
    HW = H * W
    M = B * HW
    out_isize = jnp.dtype(out_dtype).itemsize

    x3 = x.reshape(B, Cin, HW)                               # free NCHW view
    wmat = weight.reshape(Cout, Cin).astype(jnp.bfloat16)    # (Cout, Cin), once

    # ---------------- fused single-call BN fast path (small activations) ----
    if is_bn:
        fused_bytes = (B * HW * (Cin * 4 + Cout * 4 + Cout * out_isize)
                       + Cout * Cin * 2 + 2 * Cout * 4)
        if fused_bytes <= fused_bn_bytes and B <= 8:
            g2 = gamma.reshape(Cout, 1).astype(jnp.float32)
            bt2 = beta.reshape(Cout, 1).astype(jnp.float32)
            kernel = functools.partial(_pwconv_bn_fused_kernel,
                                       inv_m=1.0 / M, act=act)
            out3 = pl.pallas_call(
                kernel,
                out_shape=jax.ShapeDtypeStruct((B, Cout, HW), out_dtype),
                scratch_shapes=[pltpu.VMEM((B, Cout, HW), jnp.float32)],
                compiler_params=pltpu.CompilerParams(
                    vmem_limit_bytes=int(min(96 << 20,
                                             max(16 << 20,
                                                 2 * fused_bytes + (4 << 20))))),
            )(x3, wmat, g2, bt2)
            return out3.reshape(B, Cout, H, W)

    # ---------------- spatial (lane) tiling ---------------------------------
    if HW <= 128:
        t_hw, hw_pad = HW, HW                     # full last dim (tiny tensor)
    else:
        if hw_tile is not None:
            max_t = max(128, hw_tile // 128 * 128)
        else:
            bytes_per_lane = 2 * (Cin * 4 + Cout * out_isize)  # dbl-buffered x+out
            max_t = max(128, (hw_tile_budget_bytes // bytes_per_lane) // 128 * 128)
        hw_ceil = _round_up(HW, 128)
        if hw_ceil <= max_t:
            t_hw, hw_pad = hw_ceil, hw_ceil
        else:
            t_hw = max_t
            hw_pad = _round_up(HW, t_hw)
    if hw_pad != HW:
        # Zero spatial padding: padded columns give y = W @ 0 = 0 in the BN
        # variant (no conv bias), so BN statistics are never polluted; the pad
        # region of the output is sliced away below.
        x3 = jnp.pad(x3, ((0, 0), (0, 0), (0, hw_pad - HW)))
    n_hw = hw_pad // t_hw

    vmem_limit = int(min(48 << 20,
                         max(16 << 20,
                             2 * t_hw * (Cin * 4 + Cout * out_isize)
                             + 2 * (Cout * Cin * 2 + 4 * Cout * 4)
                             + Cin * Cin * 4 + (6 << 20))))

    x_spec = pl.BlockSpec((1, Cin, t_hw), lambda b, j: (b, 0, j))
    w_spec = pl.BlockSpec((Cout, Cin), lambda b, j: (0, 0))
    p_spec = pl.BlockSpec((Cout, 1), lambda b, j: (0, 0))
    o_spec = pl.BlockSpec((1, Cout, t_hw), lambda b, j: (b, 0, j))
    out_shape = jax.ShapeDtypeStruct((B, Cout, hw_pad), out_dtype)

    if is_bn:
        # ---- pass 1: exact per-channel stats via colsum + Gram matrix ------
        colsum, gram = pl.pallas_call(
            _bn_stats_kernel,
            grid=(B, n_hw),
            in_specs=[x_spec],
            out_shape=(jax.ShapeDtypeStruct((Cin, 1), jnp.float32),
                       jax.ShapeDtypeStruct((Cin, Cin), jnp.float32)),
            out_specs=(pl.BlockSpec((Cin, 1), lambda b, j: (0, 0)),
                       pl.BlockSpec((Cin, Cin), lambda b, j: (0, 0))),
            compiler_params=pltpu.CompilerParams(
                dimension_semantics=("arbitrary", "arbitrary"),
                vmem_limit_bytes=vmem_limit),
        )(x3)

        # Tiny f32 finalize in the wrapper (uses the same bf16-quantized W).
        wf = wmat.astype(jnp.float32)
        inv_m = 1.0 / M
        mean = (wf @ colsum) * inv_m                               # (Cout, 1)
        ey2 = jnp.sum((wf @ gram) * wf, axis=1, keepdims=True) * inv_m
        var = jnp.maximum(ey2 - mean * mean, 0.0)                  # biased
        scale = gamma.reshape(Cout, 1).astype(jnp.float32) * lax.rsqrt(var + _BN_EPS)
        shift = beta.reshape(Cout, 1).astype(jnp.float32) - mean * scale

        # ---- pass 2: matmul + normalize + activate (fully parallel) --------
        kernel = functools.partial(_pw_scale_shift_act_kernel, act=act)
        out3 = pl.pallas_call(
            kernel,
            grid=(B, n_hw),
            in_specs=[x_spec, w_spec, p_spec, p_spec],
            out_shape=out_shape,
            out_specs=o_spec,
            compiler_params=pltpu.CompilerParams(
                dimension_semantics=("parallel", "parallel"),
                vmem_limit_bytes=vmem_limit),
        )(x3, wmat, scale, shift)
    else:
        b2 = bias.reshape(Cout, 1).astype(jnp.float32)
        kernel = functools.partial(_pw_bias_act_kernel, act=act)
        out3 = pl.pallas_call(
            kernel,
            grid=(B, n_hw),
            in_specs=[x_spec, w_spec, p_spec],
            out_shape=out_shape,
            out_specs=o_spec,
            compiler_params=pltpu.CompilerParams(
                dimension_semantics=("parallel", "parallel"),
                vmem_limit_bytes=vmem_limit),
        )(x3, wmat, b2)

    if hw_pad != HW:
        out3 = out3[:, :, :HW]
    return out3.reshape(B, Cout, H, W)


# ----------------------------------------------------------------------------
# Pure-JAX reference (same bf16 operand quantization as the kernel)
# ----------------------------------------------------------------------------
def pwconv_reference(x, weight, *, bias=None, gamma=None, beta=None,
                     is_bn=False, act_name="relu"):
    act = act_name.lower()
    B, Cin, H, W = x.shape
    Cout = weight.shape[0]
    xb = x.reshape(B, Cin, H * W).astype(jnp.bfloat16)
    wb = weight.reshape(Cout, Cin).astype(jnp.bfloat16)
    y = jnp.einsum("oc,bcl->bol", wb, xb, preferred_element_type=jnp.float32)
    if is_bn:
        mean = jnp.mean(y, axis=(0, 2), keepdims=True)
        var = jnp.mean(jnp.square(y - mean), axis=(0, 2), keepdims=True)  # biased
        y = (y - mean) * lax.rsqrt(var + _BN_EPS) * gamma.reshape(1, -1, 1) \
            + beta.reshape(1, -1, 1)
    else:
        y = y + bias.reshape(1, -1, 1)
    if act == "relu":
        y = jnp.maximum(y, 0.0)
    elif act == "leaky":
        y = jnp.where(y > 0, y, 0.2 * y)
    elif act == "tanh":
        y = jnp.tanh(y)
    elif act == "sigmoid":
        y = jax.nn.sigmoid(y)
    return y.reshape(B, Cout, H, W)


# ----------------------------------------------------------------------------
# Demo / self-check
# ----------------------------------------------------------------------------
if __name__ == "__main__":
    # TODO(synk): BatchNorm2d running-stat (momentum) buffer updates are not
    # modelled; forward uses PyTorch training-mode batch statistics.
    key = jax.random.PRNGKey(0)
    case_keys = jax.random.split(key, 5)

    def run_case(k, B, Cin, H, W, Cout, is_bn, act_name, **kw):
        kx, kwt, kb, kg, kbt = jax.random.split(k, 5)
        x = jax.random.normal(kx, (B, Cin, H, W), jnp.float32)
        w = 0.05 * jax.random.normal(kwt, (Cout, Cin, 1, 1), jnp.float32)
        bias = gamma = beta = None
        if is_bn:
            gamma = 1.0 + 0.1 * jax.random.normal(kg, (Cout,), jnp.float32)
            beta = 0.1 * jax.random.normal(kbt, (Cout,), jnp.float32)
        else:
            bias = 0.1 * jax.random.normal(kb, (Cout,), jnp.float32)
        out = pwconv_forward(x, w, bias=bias, gamma=gamma, beta=beta,
                             is_bn=is_bn, act_name=act_name, **kw)
        out = jax.block_until_ready(out)
        ref = pwconv_reference(x, w, bias=bias, gamma=gamma, beta=beta,
                               is_bn=is_bn, act_name=act_name)
        assert out.shape == (B, Cout, H, W), (out.shape, (B, Cout, H, W))
        assert bool(jnp.all(jnp.isfinite(out))), act_name
        assert bool(jnp.allclose(out, ref, rtol=2e-2, atol=2e-2)), act_name

    # BN + ReLU: two-pass tiled path, 2 HW tiles per batch (cross-tile stats).
    run_case(case_keys[0], 2, 64, 16, 16, 128, True, "relu",
             fused_bn_bytes=0, hw_tile=128)
    # BN + LeakyReLU(0.2): fused single-call fast path, HW < 128 lanes.
    run_case(case_keys[1], 2, 48, 10, 10, 96, True, "leaky")
    # BN + Tanh: two-pass tiled path with zero-padded HW (144 -> 256).
    run_case(case_keys[2], 2, 32, 12, 12, 64, True, "tanh",
             fused_bn_bytes=0, hw_tile=128)
    # bias + Sigmoid (non-BN), lane-dense single HW tile.
    run_case(case_keys[3], 2, 32, 16, 16, 64, False, "sigmoid")
    # bias + Tanh, HW padded 144 -> 256 (pad lanes sliced off).
    run_case(case_keys[4], 2, 16, 12, 12, 32, False, "tanh")

    print("KERNEL_OK")
</pallas_src>

<mosaic_0001>
module attributes {stable_mosaic.version = 11 : i64} {
  func.func @_bn_stats_kernel(%arg0: i32, %arg1: i32, %arg2: memref<1x64x128xf32, #tpu.memory_space<vmem>>, %arg3: memref<64x1xf32, #tpu.memory_space<vmem>>, %arg4: memref<64x64xf32, #tpu.memory_space<vmem>>) attributes {dimension_semantics = [#tpu.dimension_semantics<arbitrary>, #tpu.dimension_semantics<arbitrary>], iteration_bounds = array<i64: 2, 2>, scalar_prefetch = 0 : i64, scratch_operands = 0 : i64, tpu.core_type = #tpu.core_type<tc>, window_params = [{transform_indices = @transform_0, window_bounds = array<i64: 1, 64, 128>}, {pipeline_mode = #tpu.pipeline_mode<synchronous>, transform_indices = @transform_1, window_bounds = array<i64: 64, 1>}, {pipeline_mode = #tpu.pipeline_mode<synchronous>, transform_indices = @transform_2, window_bounds = array<i64: 64, 64>}]} {
    %c0_i32 = arith.constant 0 : i32
    %0 = arith.cmpi eq, %arg0, %c0_i32 : i32
    %c0_i32_0 = arith.constant 0 : i32
    %1 = arith.cmpi eq, %arg1, %c0_i32_0 : i32
    %2 = arith.andi %0, %1 : i1
    %3 = arith.extui %2 : i1 to i32
    %c0_i32_1 = arith.constant 0 : i32
    %4 = arith.cmpi ne, %3, %c0_i32_1 : i32
    scf.if %4 {
      %cst_13 = arith.constant 0.000000e+00 : f32
      %18 = vector.broadcast %cst_13 : f32 to vector<64x1xf32>
      %c0_14 = arith.constant 0 : index
      %c0_15 = arith.constant 0 : index
      %19 = vector.load %arg3[%c0_14, %c0_15] : memref<64x1xf32, #tpu.memory_space<vmem>>, vector<64x1xf32>
      tpu.vector_store %arg3[%c0_14, %c0_15], %18 {strides = array<i32>} : memref<64x1xf32, #tpu.memory_space<vmem>>, vector<64x1xf32>,
      %cst_16 = arith.constant 0.000000e+00 : f32
      %20 = vector.broadcast %cst_16 : f32 to vector<64x64xf32>
      %c0_17 = arith.constant 0 : index
      %c0_18 = arith.constant 0 : index
      %21 = vector.load %arg4[%c0_17, %c0_18] : memref<64x64xf32, #tpu.memory_space<vmem>>, vector<64x64xf32>
      tpu.vector_store %arg4[%c0_17, %c0_18], %20 {strides = array<i32>} : memref<64x64xf32, #tpu.memory_space<vmem>>, vector<64x64xf32>,
    } else {
    }
    %c0 = arith.constant 0 : index
    %c0_2 = arith.constant 0 : index
    %c0_3 = arith.constant 0 : index
    %5 = vector.load %arg2[%c0, %c0_2, %c0_3] : memref<1x64x128xf32, #tpu.memory_space<vmem>>, vector<1x64x128xf32>
    %6 = vector.shape_cast %5 : vector<1x64x128xf32> to vector<64x128xf32>
    %7 = arith.truncf %6 : vector<64x128xf32> to vector<64x128xbf16>
    %c0_4 = arith.constant 0 : index
    %c0_5 = arith.constant 0 : index
    %8 = vector.load %arg3[%c0_4, %c0_5] : memref<64x1xf32, #tpu.memory_space<vmem>>, vector<64x1xf32>
    %9 = arith.extf %7 : vector<64x128xbf16> to vector<64x128xf32>
    %cst = arith.constant dense<0.000000e+00> : vector<64xf32>
    %10 = vector.multi_reduction <add>, %9, %cst [1] : vector<64x128xf32> to vector<64xf32>
    %11 = vector.shape_cast %10 : vector<64xf32> to vector<64x1xf32>
    %12 = arith.addf %8, %11 : vector<64x1xf32>
    %c0_6 = arith.constant 0 : index
    %c0_7 = arith.constant 0 : index
    %13 = vector.load %arg3[%c0_6, %c0_7] : memref<64x1xf32, #tpu.memory_space<vmem>>, vector<64x1xf32>
    tpu.vector_store %arg3[%c0_6, %c0_7], %12 {strides = array<i32>} : memref<64x1xf32, #tpu.memory_space<vmem>>, vector<64x1xf32>,
    %c0_8 = arith.constant 0 : index
    %c0_9 = arith.constant 0 : index
    %14 = vector.load %arg4[%c0_8, %c0_9] : memref<64x64xf32, #tpu.memory_space<vmem>>, vector<64x64xf32>
    %cst_10 = arith.constant dense<0.000000e+00> : vector<64x64xf32>
    %15 = tpu.matmul %7, %7, %cst_10 {dimension_numbers = #tpu.dot_dimension_numbers<[1], [1], [0], [0], [0, 0, 1, 0], [], []>} : vector<64x128xbf16>, vector<64x128xbf16>, vector<64x64xf32> -> vector<64x64xf32>
    %16 = arith.addf %14, %15 : vector<64x64xf32>
    %c0_11 = arith.constant 0 : index
    %c0_12 = arith.constant 0 : index
    %17 = vector.load %arg4[%c0_11, %c0_12] : memref<64x64xf32, #tpu.memory_space<vmem>>, vector<64x64xf32>
    tpu.vector_store %arg4[%c0_11, %c0_12], %16 {strides = array<i32>} : memref<64x64xf32, #tpu.memory_space<vmem>>, vector<64x64xf32>,
    return
  }
  func.func @transform_0(%arg0: i32, %arg1: i32) -> (i32, i32, i32) {
    %c0_i32 = arith.constant 0 : i32
    %c0_i32_0 = arith.constant 0 : i32
    return %arg0, %c0_i32, %arg1 : i32, i32, i32
  }
  func.func @transform_1(%arg0: i32, %arg1: i32) -> (i32, i32) {
    %c0_i32 = arith.constant 0 : i32
    %c0_i32_0 = arith.constant 0 : i32
    %c0_i32_1 = arith.constant 0 : i32
    return %c0_i32, %c0_i32_0 : i32, i32
  }
  func.func @transform_2(%arg0: i32, %arg1: i32) -> (i32, i32) {
    %c0_i32 = arith.constant 0 : i32
    %c0_i32_0 = arith.constant 0 : i32
    %c0_i32_1 = arith.constant 0 : i32
    return %c0_i32, %c0_i32_0 : i32, i32
  }
}

</mosaic_0001>

<llo_original>
// kernel: tpu_custom_call.1
$region0: #{tpu_custom_call.1}
  #allocation0 [shape = 'u32[]', space=smem, size = 0x4, offset = 0x4, fixed_abs, tag = 'smem constant byte address 0x4 - core index']
  #allocation1 [shape = 'u32[144,128]{1,0:T(1,128)}', space=vmem, size = 0x12000, scoped, tag = 'internal scratch']
  %s0 = inlined_call_operand.hbm [shape: f32[2,64,256], index: 0, kind: input, shape index: {}]
  %s1 = inlined_call_operand.vmem [shape: f32[64,1], index: 1, kind: output, shape index: {0}]
  %s2 = inlined_call_operand.hbm [shape: f32[64,64], index: 2, kind: output, shape index: {1}]
  %3 = xla_tuple %s1, %s2
  %s4 = sld [smem:[#allocation0]]
  $region53: #{tpu_custom_call.1} parent=0
    _
  %s6 = ssub.s32 1, %s4
  %s7 = scalar_select 0, %s6, %s4
  $region1: #{tpu_custom_call.1} parent=0
    #allocation2 [shape = 'u8[65536]{0}', space=vmem, size = 0x10000, scoped, tag = 'input window, operand 0']
    #allocation3 [shape = 's32[2]{0}', space=sflag, size = 0x8, scoped, tag = 'scoped memory for tpu_custom_call.1']
    #allocation4 [shape = 's32[2]{0}', space=sflag, size = 0x8, scoped, tag = 'scoped memory for tpu_custom_call.1']
    #allocation5 [shape = 'u8[32768]{0}', space=vmem, size = 0x8000, scoped, tag = 'output window, operand 1, single buffered']
    %8 = vsyncpa [#allocation3], 0
    %s9 = scalar_lea.sflag [#allocation3], 1
    %10 = vsyncpa %s9, 0
    %11 = vsyncpa [#allocation4], 0
    loop: start=0, step=1, limit=6
    $region2: #{tpu_custom_call.1} parent=1 // loop_pre_header
      _
    $region3: #{tpu_custom_call.1} parent=1 // loop_header
      %s13 = sphi 0, %s17
      %p14 = scmp.ge.s32.totalorder %s13, 6
      %s20 = sphi 0, %s32
      %s21 = sphi 0, %s28
      %s22 = sphi 0, %s20
      %s23 = sphi 0, %s21
      %s24 = sphi 0, %s22
      %s25 = sphi 0, %s23
      %s37 = sphi 0, %s39
      %s40 = sphi 0, %s37
      %s41 = sphi 0, %s40
      %s57 = sphi 0, %s41
      %s61 = sphi 0, %s61
      %s63 = sphi 0, %s61
      %s64 = sphi 0, %s63
      %s78 = sphi 0, %s64
      %s82 = sphi 0, %s82
      %s84 = sphi 0, %s82
      %s85 = sphi 0, %s84
      %s99 = sphi 0, %s85
    $region4: #{tpu_custom_call.1} parent=1 // loop_header_branch
      %16 = sbr.rel (%p14) target = $region8
    $region5: #{tpu_custom_call.1} parent=1 // loop_body
      %s18 = ssub.s32 %s13, 1
      %s19 = ssub.s32 %s13, 2
      %s26 = sadd.s32 1, %s21
      %p27 = scmp.ge.s32.totalorder %s26, 2
      %s28 = scalar_select %p27, 0, %s26
      %s29 = sadd.s32 1, %s20
      %s30 = scalar_select %p27, %s29, %s20
      %p31 = scmp.ge.s32.totalorder %s30, 2
      %s32 = scalar_select %p31, 0, %s30
      %s33 = ssub.s32 %s20, %s32
      %s34 = ssub.s32 %s21, %s28
      %s35 = sor.u32 %s33, %s34
      %p36 = scmp.eq.s32.totalorder %s35, 0
      %s38 = sadd.s32 %s37, 1
      %s39 = scalar_select %p36, %s37, %s38
      %p42 = pneg %p36
      %p43 = scmp.eq.s32.totalorder %s13, 3
      %p44 = por %p42, %p43
      %p45 = scmp.ne.s32.totalorder %s37, %s40
      %p46 = scmp.eq.s32.totalorder %s13, 0
      %p47 = por %p45, %p46
      %p48 = scmp.ne.s32.totalorder %s37, %s40
      %p49 = scmp.eq.s32.totalorder %s18, 3
      %p50 = por %p48, %p49
      %p51 = scmp.ne.s32.totalorder %s40, %s41
      %p52 = scmp.eq.s32.totalorder %s18, 0
      %p53 = por %p51, %p52
      %p54 = scmp.ne.s32.totalorder %s40, %s41
      %p55 = scmp.eq.s32.totalorder %s19, 3
      %p56 = por %p54, %p55
      %p58 = scmp.ne.s32.totalorder %s41, %s57
      %p59 = scmp.eq.s32.totalorder %s19, 0
      %p60 = por %p58, %p59
      %s62 = sadd.s32 %s61, 1
      %p65 = scmp.eq.s32.totalorder %s13, 3
      %p66 = scmp.ne.s32.totalorder %s61, %s63
      %p67 = scmp.eq.s32.totalorder %s13, 0
      %p68 = por %p66, %p67
      %p69 = scmp.ne.s32.totalorder %s61, %s63
      %p70 = scmp.eq.s32.totalorder %s18, 3
      %p71 = por %p69, %p70
      %p72 = scmp.ne.s32.totalorder %s63, %s64
      %p73 = scmp.eq.s32.totalorder %s18, 0
      %p74 = por %p72, %p73
      %p75 = scmp.ne.s32.totalorder %s63, %s64
      %p76 = scmp.eq.s32.totalorder %s19, 3
      %p77 = por %p75, %p76
      %p79 = scmp.ne.s32.totalorder %s64, %s78
      %p80 = scmp.eq.s32.totalorder %s19, 0
      %p81 = por %p79, %p80
      %s83 = sadd.s32 %s82, 1
      %p86 = scmp.eq.s32.totalorder %s13, 3
      %p87 = scmp.ne.s32.totalorder %s82, %s84
      %p88 = scmp.eq.s32.totalorder %s13, 0
      %p89 = por %p87, %p88
      %p90 = scmp.ne.s32.totalorder %s82, %s84
      %p91 = scmp.eq.s32.totalorder %s18, 3
      %p92 = por %p90, %p91
      %p93 = scmp.ne.s32.totalorder %s84, %s85
      %p94 = scmp.eq.s32.totalorder %s18, 0
      %p95 = por %p93, %p94
      %p96 = scmp.ne.s32.totalorder %s84, %s85
      %p97 = scmp.eq.s32.totalorder %s19, 3
      %p98 = por %p96, %p97
      %p100 = scmp.ne.s32.totalorder %s85, %s99
      %p101 = scmp.eq.s32.totalorder %s19, 0
      %p102 = por %p100, %p101
      %p103 = scmp.le.s32.totalorder 1, %s13
      %p104 = scmp.lt.s32.totalorder %s13, 5
      %p105 = pnand %p103, %p104
      %p106 = pneg %p105
      // Predicated region
      $region9: #{tpu_custom_call.1} parent=5 // pred_check
        _
      $region10: #{tpu_custom_call.1} parent=5 // pred_check_branch
        %108 = sbr.rel (%p105) target = $region12
      $region11: #{tpu_custom_call.1} parent=5 // pred_region
        %s109 = ssub.s32 %s13, 1
      $region12: #{tpu_custom_call.1} parent=5 // pred_fallthru
        _
      %p110 = scmp.lt.s32.totalorder %s13, 4
      // Predicated region
      $region13: #{tpu_custom_call.1} parent=5 // pred_check
        %p111 = pneg %p110
      $region14: #{tpu_custom_call.1} parent=5 // pred_check_branch
        %113 = sbr.rel (%p111) target = $region16
      $region15: #{tpu_custom_call.1} parent=5 // pred_region
        // Predicated region
        $region17: #{tpu_custom_call.1} parent=15 // pred_check
          %p114 = pneg %p47
        $region18: #{tpu_custom_call.1} parent=15 // pred_check_branch
          %116 = sbr.rel (%p114) target = $region20
        $region19: #{tpu_custom_call.1} parent=15 // pred_region
          %s117 = sand.u32 %s37, 1
          %s118 = scalar_lea.sflag [#allocation3], %s117
          %s119 = sand.u32 %s37, 1
          %s120 = smul.addr %s119, 64
          %s121 = scalar_lea.vmem [#allocation2], %s120
          %s123 = ssub.s32 1024, 1024
          %124 = vsyncadd %s118, %s123
          %s125 = smul.addr %s20, 16
          %s126 = sadd.s32 %s21, %s125
          %s127 = smul.addr %s126, 128
          %s128 = scalar_lea.hbm %s0, %s127
          %s129 = sshll.u32 %s121, 4
          %s130 = int_to_ptr.vmem [resolvable:$true] %s129
          %135 = dma.hbm_to_vmem [thread:$0]  %s128, 1024, %s130, %s118, 256, 128, 8
        $region20: #{tpu_custom_call.1} parent=15 // pred_fallthru
          _
      $region16: #{tpu_custom_call.1} parent=5 // pred_fallthru
        _
      %p136 = scmp.le.s32.totalorder 1, %s13
      %p137 = scmp.lt.s32.totalorder %s13, 5
      %p138 = pnand %p136, %p137
      %p139 = pneg %p138
      // Predicated region
      $region21: #{tpu_custom_call.1} parent=5 // pred_check
        _
      $region22: #{tpu_custom_call.1} parent=5 // pred_check_branch
        %141 = sbr.rel (%p138) target = $region24
      $region23: #{tpu_custom_call.1} parent=5 // pred_region
        %s142 = ssub.s32 %s13, 1
        %s143 = sand.u32 %s40, 1
        %s144 = scalar_lea.sflag [#allocation3], %s143
        %s145 = sand.u32 %s40, 1
        %s146 = smul.addr %s145, 64
        %s147 = scalar_lea.vmem [#allocation2], %s146
        // Predicated region
        $region25: #{tpu_custom_call.1} parent=23 // pred_check
          %p148 = pneg %p53
        $region26: #{tpu_custom_call.1} parent=23 // pred_check_branch
          %150 = sbr.rel (%p148) target = $region28
        $region27: #{tpu_custom_call.1} parent=23 // pred_region
          %151 = dma.done %s144, 1024
        $region28: #{tpu_custom_call.1} parent=23 // pred_fallthru
          _
        %s152 = sand.u32 %s40, 1
        %s153 = scalar_lea.sflag [#allocation3], %s152
        %s154 = sand.u32 %s40, 1
        %s155 = smul.addr %s154, 64
        %s156 = scalar_lea.vmem [#allocation2], %s155
        %p157 = pneg %p53
        %p158 = pneg %p50
        %p159 = pneg %p74
        %p160 = pneg %p71
        %p161 = pneg %p95
        %p162 = pneg %p92
        %p164 = scmp.eq.s32.totalorder %s22, 0
        %p165 = scmp.eq.s32.totalorder %s23, 0
        %p166 = pnand %p164, %p165
        %p167 = pneg %p166
        // Predicated region
        $region29: #{tpu_custom_call.1} parent=23 // pred_check
          _
        $region30: #{tpu_custom_call.1} parent=23 // pred_check_branch
          %169 = sbr.rel (%p166) target = $region32
        $region31: #{tpu_custom_call.1} parent=23 // pred_region
          %vm170 = vcmask 7168
          %171 = vst.msk [vmem:[%s1] sm:$0xff] %vm170, 0.0
          %172 = vst.msk [vmem:[%s1 + $0x8] sm:$0xff] %vm170, 0.0
          %173 = vst.msk [vmem:[%s1 + $0x10] sm:$0xff] %vm170, 0.0
          %174 = vst.msk [vmem:[%s1 + $0x18] sm:$0xff] %vm170, 0.0
          %175 = vst.msk [vmem:[%s1 + $0x20] sm:$0xff] %vm170, 0.0
          %176 = vst.msk [vmem:[%s1 + $0x28] sm:$0xff] %vm170, 0.0
          %177 = vst.msk [vmem:[%s1 + $0x30] sm:$0xff] %vm170, 0.0
          %178 = vst.msk [vmem:[%s1 + $0x38] sm:$0xff] %vm170, 0.0
          %vm179 = vcmask 523264
          %180 = vst.msk [vmem:[#allocation5] sm:$0xff] %vm179, 0.0
          %181 = vst.msk [vmem:[#allocation5 + $0x8] sm:$0xff] %vm179, 0.0
          %182 = vst.msk [vmem:[#allocation5 + $0x10] sm:$0xff] %vm179, 0.0
          %183 = vst.msk [vmem:[#allocation5 + $0x18] sm:$0xff] %vm179, 0.0
          %184 = vst.msk [vmem:[#allocation5 + $0x20] sm:$0xff] %vm179, 0.0
          %185 = vst.msk [vmem:[#allocation5 + $0x28] sm:$0xff] %vm179, 0.0
          %186 = vst.msk [vmem:[#allocation5 + $0x30] sm:$0xff] %vm179, 0.0
          %187 = vst.msk [vmem:[#allocation5 + $0x38] sm:$0xff] %vm179, 0.0
        $region32: #{tpu_custom_call.1} parent=23 // pred_fallthru
          _
        %v188 = vld [vmem:[%s147] sm:$0xff]
        %v189 = vld [vmem:[%s147 + $0x8] sm:$0xff]
        %v190 = vld [vmem:[%s147 + $0x10] sm:$0xff]
        %v191 = vld [vmem:[%s147 + $0x18] sm:$0xff]
        %v192 = vld [vmem:[%s147 + $0x20] sm:$0xff]
        %v193 = vld [vmem:[%s147 + $0x28] sm:$0xff]
        %v194 = vld [vmem:[%s147 + $0x30] sm:$0xff]
        %v195 = vld [vmem:[%s147 + $0x38] sm:$0xff]
        %v196 = vpack.c.bf16 %v189, %v188
        %v197 = vpack.c.bf16 %v191, %v190
        %v198 = vpack.c.bf16 %v193, %v192
        %v199 = vpack.c.bf16 %v195, %v194
        %v200 = vld [vmem:[%s1] sm:$0xff]
        %v201 = vld [vmem:[%s1 + $0x8] sm:$0xff]
        %v202 = vld [vmem:[%s1 + $0x10] sm:$0xff]
        %v203 = vld [vmem:[%s1 + $0x18] sm:$0xff]
        %v204 = vld [vmem:[%s1 + $0x20] sm:$0xff]
        %v205 = vld [vmem:[%s1 + $0x28] sm:$0xff]
        %v206 = vld [vmem:[%s1 + $0x30] sm:$0xff]
        %v207 = vld [vmem:[%s1 + $0x38] sm:$0xff]
        %v208 = vunpack.c.l.bf16 %v196
        %v209 = vunpack.c.h.bf16 %v196
        %v210 = vunpack.c.l.bf16 %v197
        %v211 = vunpack.c.h.bf16 %v197
        %v212 = vunpack.c.l.bf16 %v198
        %v213 = vunpack.c.h.bf16 %v198
        %v214 = vunpack.c.l.bf16 %v199
        %v215 = vunpack.c.h.bf16 %v199
        %216 = vadd.xlane.f32.xlu0 %v208
        %v217 = vpop.xlane.xlu0 %216
        %218 = vadd.xlane.f32.xlu0 %v209
        %v219 = vpop.xlane.xlu0 %218
        %220 = vadd.xlane.f32.xlu0 %v210
        %v221 = vpop.xlane.xlu0 %220
        %222 = vadd.xlane.f32.xlu0 %v211
        %v223 = vpop.xlane.xlu0 %222
        %224 = vadd.xlane.f32.xlu0 %v212
        %v225 = vpop.xlane.xlu0 %224
        %226 = vadd.xlane.f32.xlu0 %v213
        %v227 = vpop.xlane.xlu0 %226
        %228 = vadd.xlane.f32.xlu0 %v214
        %v229 = vpop.xlane.xlu0 %228
        %230 = vadd.xlane.f32.xlu0 %v215
        %v231 = vpop.xlane.xlu0 %230
        %v232 = vadd.f32 %v200, %v217
        %v233 = vadd.f32 %v201, %v219
        %v234 = vadd.f32 %v202, %v221
        %v235 = vadd.f32 %v203, %v223
        %v236 = vadd.f32 %v204, %v225
        %v237 = vadd.f32 %v205, %v227
        %v238 = vadd.f32 %v206, %v229
        %v239 = vadd.f32 %v207, %v231
        %vm240 = vcmask 7168
        %241 = vst.msk [vmem:[%s1] sm:$0xff] %vm240, %v232
        %242 = vst.msk [vmem:[%s1 + $0x8] sm:$0xff] %vm240, %v233
        %243 = vst.msk [vmem:[%s1 + $0x10] sm:$0xff] %vm240, %v234
        %244 = vst.msk [vmem:[%s1 + $0x18] sm:$0xff] %vm240, %v235
        %245 = vst.msk [vmem:[%s1 + $0x20] sm:$0xff] %vm240, %v236
        %246 = vst.msk [vmem:[%s1 + $0x28] sm:$0xff] %vm240, %v237
        %247 = vst.msk [vmem:[%s1 + $0x30] sm:$0xff] %vm240, %v238
        %248 = vst.msk [vmem:[%s1 + $0x38] sm:$0xff] %vm240, %v239
        %v249 = vld [vmem:[#allocation5] sm:$0xff]
        %v250 = vld [vmem:[#allocation5 + $0x8] sm:$0xff]
        %v251 = vld [vmem:[#allocation5 + $0x10] sm:$0xff]
        %v252 = vld [vmem:[#allocation5 + $0x18] sm:$0xff]
        %v253 = vld [vmem:[#allocation5 + $0x20] sm:$0xff]
        %v254 = vld [vmem:[#allocation5 + $0x28] sm:$0xff]
        %v255 = vld [vmem:[#allocation5 + $0x30] sm:$0xff]
        %v256 = vld [vmem:[#allocation5 + $0x38] sm:$0xff]
        %257 = vmatprep.subr.bf16.mxu0 0
        %258 = vmatpush1.bf16.xpose.msra.mxu0 %v196
        %259 = vmatprep.subr.bf16.mxu0 0
        %260 = vmatpush1.bf16.xpose.msra.mxu0 %v197
        %261 = vmatprep.subr.bf16.mxu0 0
        %262 = vmatpush1.bf16.xpose.msra.mxu0 %v198
        %263 = vmatprep.subr.bf16.mxu0 0
        %264 = vmatpush1.bf16.xpose.msra.mxu0 %v199
        %265 = vmatprep.subr.bf16.mxu0 0
        %266 = vmatpush1.bf16.xpose.msra.mxu0 0
        %267 = vmatprep.subr.bf16.mxu0 0
        %268 = vmatpush1.bf16.xpose.msra.mxu0 0
        %269 = vmatprep.subr.bf16.mxu0 0
        %270 = vmatpush1.bf16.xpose.msra.mxu0 0
        %271 = vmatprep.subr.bf16.mxu0 0
        %272 = vmatpush1.bf16.xpose.msra.mxu0 0
        %273 = vmatprep.subr.bf16.mxu0 0
        %274 = vmatpush1.bf16.xpose.msra.mxu0 0
        %275 = vmatprep.subr.bf16.mxu0 0
        %276 = vmatpush1.bf16.xpose.msra.mxu0 0
        %277 = vmatprep.subr.bf16.mxu0 0
        %278 = vmatpush1.bf16.xpose.msra.mxu0 0
        %279 = vmatprep.subr.bf16.mxu0 0
        %280 = vmatpush1.bf16.xpose.msra.mxu0 0
        %281 = vmatprep.subr.bf16.mxu0 0
        %282 = vmatpush1.bf16.xpose.msra.mxu0 0
        %283 = vmatprep.subr.bf16.mxu0 0
        %284 = vmatpush1.bf16.xpose.msra.mxu0 0
        %285 = vmatprep.subr.bf16.mxu0 0
        %286 = vmatpush1.bf16.xpose.msra.mxu0 0
        %287 = vmatprep.subr.bf16.mxu0 0
        %288 = vmatpush1.bf16.xpose.msra.mxu0 0
        %289 = vmatprep.mubr.bf16.mxu0 0
        %290 = vmatmul.mubr.bf16.gmra.mrb[0].mxu0 %v196
        %v291 = vpop.f32.mrb[0].mxu0
        %v292 = vadd.f32 0.0, %v291
        %v293 = vpop.f32.mrb[0].mxu0
        %v294 = vpop.f32.mrb[0].mxu0
        %v295 = vadd.f32 0.0, %v294
        %v296 = vpop.f32.mrb[0].mxu0
        %297 = vmatprep.mubr.bf16.mxu0 0
        %298 = vmatmul.mubr.bf16.gmra.mrb[0].mxu0 %v197
        %v299 = vpop.f32.mrb[0].mxu0
        %v300 = vadd.f32 0.0, %v299
        %v301 = vpop.f32.mrb[0].mxu0
        %v302 = vpop.f32.mrb[0].mxu0
        %v303 = vadd.f32 0.0, %v302
        %v304 = vpop.f32.mrb[0].mxu0
        %305 = vmatprep.mubr.bf16.mxu0 0
        %306 = vmatmul.mubr.bf16.gmra.mrb[0].mxu0 %v198
        %v307 = vpop.f32.mrb[0].mxu0
        %v308 = vadd.f32 0.0, %v307
        %v309 = vpop.f32.mrb[0].mxu0
        %v310 = vpop.f32.mrb[0].mxu0
        %v311 = vadd.f32 0.0, %v310
        %v312 = vpop.f32.mrb[0].mxu0
        %313 = vmatprep.mubr.bf16.mxu0 0
        %314 = vmatmul.mubr.bf16.gmra.mrb[0].mxu0 %v199
        %v315 = vpop.f32.mrb[0].mxu0
        %v316 = vadd.f32 0.0, %v315
        %v317 = vpop.f32.mrb[0].mxu0
        %v318 = vpop.f32.mrb[0].mxu0
        %v319 = vadd.f32 0.0, %v318
        %v320 = vpop.f32.mrb[0].mxu0
        %321 = vdwg.mxu0
        %v322 = vadd.f32 %v249, %v292
        %v323 = vadd.f32 %v250, %v295
        %v324 = vadd.f32 %v251, %v300
        %v325 = vadd.f32 %v252, %v303
        %v326 = vadd.f32 %v253, %v308
        %v327 = vadd.f32 %v254, %v311
        %v328 = vadd.f32 %v255, %v316
        %v329 = vadd.f32 %v256, %v319
        %vm330 = vcmask 523264
        %331 = vst.msk [vmem:[#allocation5] sm:$0xff] %vm330, %v322
        %332 = vst.msk [vmem:[#allocation5 + $0x8] sm:$0xff] %vm330, %v323
        %333 = vst.msk [vmem:[#allocation5 + $0x10] sm:$0xff] %vm330, %v324
        %334 = vst.msk [vmem:[#allocation5 + $0x18] sm:$0xff] %vm330, %v325
        %335 = vst.msk [vmem:[#allocation5 + $0x20] sm:$0xff] %vm330, %v326
        %336 = vst.msk [vmem:[#allocation5 + $0x28] sm:$0xff] %vm330, %v327
        %337 = vst.msk [vmem:[#allocation5 + $0x30] sm:$0xff] %vm330, %v328
        %338 = vst.msk [vmem:[#allocation5 + $0x38] sm:$0xff] %vm330, %v329
        // Predicated region
        $region33: #{tpu_custom_call.1} parent=23 // pred_check
          %p339 = pneg %p71
        $region34: #{tpu_custom_call.1} parent=23 // pred_check_branch
          %341 = sbr.rel (%p339) target = $region36
        $region35: #{tpu_custom_call.1} parent=23 // pred_region
          _
        $region36: #{tpu_custom_call.1} parent=23 // pred_fallthru
          _
        // Predicated region
        $region37: #{tpu_custom_call.1} parent=23 // pred_check
          %p342 = pneg %p92
        $region38: #{tpu_custom_call.1} parent=23 // pred_check_branch
          %344 = sbr.rel (%p342) target = $region40
        $region39: #{tpu_custom_call.1} parent=23 // pred_region
          %s346 = ssub.s32 1024, 1024
          %347 = vsyncadd [#allocation4], %s346
          %s348 = sshll.u32 [#allocation5], 4
          %s349 = int_to_ptr.vmem [resolvable:$true] %s348
          %354 = dma.vmem_to_hbm [thread:$0]  %s349, 1024, %s2, [#allocation4], 128, 128, 8
        $region40: #{tpu_custom_call.1} parent=23 // pred_fallthru
          _
        // Predicated region
        $region41: #{tpu_custom_call.1} parent=23 // pred_check
          %p355 = pneg %p71
        $region42: #{tpu_custom_call.1} parent=23 // pred_check_branch
          %357 = sbr.rel (%p355) target = $region44
        $region43: #{tpu_custom_call.1} parent=23 // pred_region
          _
        $region44: #{tpu_custom_call.1} parent=23 // pred_fallthru
          _
        // Predicated region
        $region45: #{tpu_custom_call.1} parent=23 // pred_check
          %p358 = pneg %p92
        $region46: #{tpu_custom_call.1} parent=23 // pred_check_branch
          %360 = sbr.rel (%p358) target = $region48
        $region47: #{tpu_custom_call.1} parent=23 // pred_region
          %361 = dma.done [#allocation4], 1024
        $region48: #{tpu_custom_call.1} parent=23 // pred_fallthru
          _
      $region24: #{tpu_custom_call.1} parent=5 // pred_fallthru
        _
      %p362 = scmp.le.s32.totalorder 2, %s13
      // Predicated region
      $region49: #{tpu_custom_call.1} parent=5 // pred_check
        %p363 = pneg %p362
      $region50: #{tpu_custom_call.1} parent=5 // pred_check_branch
        %365 = sbr.rel (%p363) target = $region52
      $region51: #{tpu_custom_call.1} parent=5 // pred_region
        %s366 = ssub.s32 %s13, 2
      $region52: #{tpu_custom_call.1} parent=5 // pred_fallthru
        _
    $region6: #{tpu_custom_call.1} parent=1 // loop_footer
      %s17 = sadd.s32 1, %s13
    $region7: #{tpu_custom_call.1} parent=1 // loop_footer_branch
      %12 = sbr.rel target = $region3
    $region8: #{tpu_custom_call.1} parent=1 // loop_exit
      _
    %367 = vsyncpa [#allocation3], 1
    %s368 = scalar_lea.sflag [#allocation3], 1
    %369 = vsyncpa %s368, 1
    %370 = vsyncpa [#allocation4], 1
    %s371 = scalar_lea.sflag [#allocation4], 1
    %372 = vsyncpa %s371, 1

</llo_original>
